<compile_context>
chip_gen: v5e
topology: v5e:2x2
jax: 0.10.0
libtpu: 0.0.40
codegen_flags: <defaults>
</compile_context>

<pallas_src>
import jax
import jax.numpy as jnp
from jax.experimental import pallas as pl
from jax.experimental.pallas import tpu as pltpu


def _res_mlp_kernel(x_ref, w1_ref, b1_ref, w2_ref, b2_ref, o_ref):
    w1 = w1_ref[...]            # (d_model, d_points)   BN1 scale folded in
    b1 = b1_ref[...]            # (d_model, 1)
    w2 = w2_ref[...]            # (d_points, d_model)   BN2 scale folded in
    b2 = b2_ref[...]            # (d_points, 1)
    bblk = x_ref.shape[0]
    for b in range(bblk):       # small static unroll over the batch block (bblk <= 16)
        x = x_ref[b]            # (d_points, tn), lane-dense along the point axis
        # mlp1: 1x1 conv (d_points -> d_model) + BN shift + LeakyReLU(0.2)
        h = jnp.dot(w1, x.astype(w1.dtype), preferred_element_type=jnp.float32) + b1
        h = jnp.maximum(h, 0.2 * h)
        # mlp2: 1x1 conv (d_model -> d_points) + BN shift
        y = jnp.dot(w2, h.astype(w2.dtype), preferred_element_type=jnp.float32) + b2
        # residual + LeakyReLU(0.2)
        y = y + x.astype(jnp.float32)
        o_ref[b] = jnp.maximum(y, 0.2 * y).astype(o_ref.dtype)


def _largest_divisor_leq(n, k):
    k = max(1, min(int(k), int(n)))
    while n % k:
        k -= 1
    return k


def res_mlp_block_1d(x, params, *, tn=16384, matmul_dtype=jnp.float32):
    """ResMLPBlock1D forward. x: (B, d_points, N) float32 (PyTorch NCW layout)."""
    B, d_points, N = x.shape
    d_model = params["w1"].shape[0]
    eps = 1e-5

    # --- Fold inference-mode BatchNorm into the (bias-free) 1x1 conv weights. ---
    s1 = params["gamma1"] / jnp.sqrt(params["var1"] + eps)
    b1 = params["beta1"] - params["mean1"] * s1
    s2 = params["gamma2"] / jnp.sqrt(params["var2"] + eps)
    b2 = params["beta2"] - params["mean2"] * s2
    w1s = (params["w1"] * s1[:, None]).astype(matmul_dtype)   # (d_model, d_points)
    w2s = (params["w2"] * s2[:, None]).astype(matmul_dtype)   # (d_points, d_model)
    b1c = b1.reshape(d_model, 1).astype(jnp.float32)
    b2c = b2.reshape(d_points, 1).astype(jnp.float32)

    # --- Lane-dense tiling over the point axis. ---
    # Target ~tn columns per grid step (HBM-bound kernel: big steps amortize the fixed
    # per-step pipeline overhead).  Pad N only to a multiple of 128 per step, not to a
    # multiple of the full tile, keeping pad waste small.
    tn_target = max(128, (min(int(tn), 32768) // 128) * 128)
    n_steps = pl.cdiv(N, tn_target)
    tn_blk = pl.cdiv(N, n_steps * 128) * 128          # multiple of 128, n_steps*tn_blk >= N
    n_pad = n_steps * tn_blk

    # Fold a few batch rows into one grid step if N alone can't reach the column target,
    # while leaving >=2 grid blocks so v7x's two TensorCores both get work.
    bblk = 1
    if B > 1:
        desired = min(tn_target // tn_blk, 16)        # cap the static in-kernel unroll
        if n_steps == 1:
            desired = min(desired, B // 2)            # keep >=2 parallel blocks
        bblk = _largest_divisor_leq(B, desired)

    xp = x if n_pad == N else jnp.pad(x, ((0, 0), (0, 0), (0, n_pad - N)))
    grid = (B // bblk, n_steps)

    flops = 4 * B * n_pad * d_points * d_model        # two K-small matmuls
    bytes_accessed = (2 * B * d_points * n_pad * 4
                      + 4 * (w1s.size + w2s.size + b1c.size + b2c.size))

    full = lambda b, j: (0, 0)
    out = pl.pallas_call(
        _res_mlp_kernel,
        out_shape=jax.ShapeDtypeStruct((B, d_points, n_pad), x.dtype),
        grid_spec=pltpu.PrefetchScalarGridSpec(
            num_scalar_prefetch=0,
            grid=grid,
            in_specs=[
                pl.BlockSpec((bblk, d_points, tn_blk), lambda b, j: (b, 0, j)),  # x tile
                pl.BlockSpec((d_model, d_points), full),                         # W1 * s1
                pl.BlockSpec((d_model, 1), full),                                # b1 (column)
                pl.BlockSpec((d_points, d_model), full),                         # W2 * s2
                pl.BlockSpec((d_points, 1), full),                               # b2 (column)
            ],
            out_specs=pl.BlockSpec((bblk, d_points, tn_blk), lambda b, j: (b, 0, j)),
        ),
        compiler_params=pltpu.CompilerParams(
            dimension_semantics=("parallel", "parallel"),
            # ~0.5 KiB live VMEM per column; with bblk*tn_blk <= 32768 columns this stays
            # well under 48 MiB -> safe on v7x (64 MiB VMEM) as well as v5e/v6e (128 MiB).
            vmem_limit_bytes=48 * 1024 * 1024,
        ),
        cost_estimate=pl.CostEstimate(
            flops=flops, transcendentals=0, bytes_accessed=bytes_accessed),
    )(xp, w1s, b1c, w2s, b2c)

    return out if n_pad == N else out[:, :, :N]


def _reference(x, params):
    eps = 1e-5
    h = jnp.einsum("oc,bcn->bon", params["w1"], x)
    h = (h - params["mean1"][None, :, None]) / jnp.sqrt(params["var1"] + eps)[None, :, None]
    h = h * params["gamma1"][None, :, None] + params["beta1"][None, :, None]
    h = jnp.where(h > 0, h, 0.2 * h)
    y = jnp.einsum("oc,bcn->bon", params["w2"], h)
    y = (y - params["mean2"][None, :, None]) / jnp.sqrt(params["var2"] + eps)[None, :, None]
    y = y * params["gamma2"][None, :, None] + params["beta2"][None, :, None]
    y = y + x
    return jnp.where(y > 0, y, 0.2 * y)


if __name__ == "__main__":
    B, d_points, d_model, N = 2, 16, 32, 64

    key = jax.random.PRNGKey(0)
    ks = jax.random.split(key, 9)
    params = {
        "w1": jax.random.normal(ks[0], (d_model, d_points), jnp.float32) * 0.1,   # Conv1d(d_points->d_model, k=1, bias=False)
        "w2": jax.random.normal(ks[1], (d_points, d_model), jnp.float32) * 0.1,   # Conv1d(d_model->d_points, k=1, bias=False)
        "gamma1": 1.0 + 0.1 * jax.random.normal(ks[2], (d_model,), jnp.float32),
        "beta1": 0.1 * jax.random.normal(ks[3], (d_model,), jnp.float32),
        "mean1": 0.1 * jax.random.normal(ks[4], (d_model,), jnp.float32),
        "var1": 1.0 + 0.1 * jnp.abs(jax.random.normal(ks[5], (d_model,), jnp.float32)),
        "gamma2": 1.0 + 0.1 * jax.random.normal(ks[6], (d_points,), jnp.float32),
        "beta2": 0.1 * jax.random.normal(ks[7], (d_points,), jnp.float32),
        "mean2": jnp.zeros((d_points,), jnp.float32),
        "var2": jnp.ones((d_points,), jnp.float32),
    }

    x = jax.random.normal(ks[8], (B, d_points, N), jnp.float32)

    out = jax.block_until_ready(res_mlp_block_1d(x, params))
    ref = jax.block_until_ready(_reference(x, params))

    assert out.shape == (B, d_points, N)
    assert jnp.max(jnp.abs(out - ref)) < 1e-4, "mismatch vs reference"
    print("KERNEL_OK")
</pallas_src>

<mosaic_0001>
module attributes {stable_mosaic.version = 11 : i64} {
  func.func @_res_mlp_kernel(%arg0: i32, %arg1: i32, %arg2: memref<1x16x128xf32, #tpu.memory_space<vmem>>, %arg3: memref<32x16xf32, #tpu.memory_space<vmem>>, %arg4: memref<32x1xf32, #tpu.memory_space<vmem>>, %arg5: memref<16x32xf32, #tpu.memory_space<vmem>>, %arg6: memref<16x1xf32, #tpu.memory_space<vmem>>, %arg7: memref<1x16x128xf32, #tpu.memory_space<vmem>>) attributes {dimension_semantics = [#tpu.dimension_semantics<parallel>, #tpu.dimension_semantics<parallel>], iteration_bounds = array<i64: 2, 1>, scalar_prefetch = 0 : i64, scratch_operands = 0 : i64, tpu.core_type = #tpu.core_type<tc>, window_params = [{transform_indices = @transform_0, window_bounds = array<i64: 1, 16, 128>}, {pipeline_mode = #tpu.pipeline_mode<synchronous>, transform_indices = @transform_1, window_bounds = array<i64: 32, 16>}, {pipeline_mode = #tpu.pipeline_mode<synchronous>, transform_indices = @transform_2, window_bounds = array<i64: 32, 1>}, {pipeline_mode = #tpu.pipeline_mode<synchronous>, transform_indices = @transform_3, window_bounds = array<i64: 16, 32>}, {pipeline_mode = #tpu.pipeline_mode<synchronous>, transform_indices = @transform_4, window_bounds = array<i64: 16, 1>}, {transform_indices = @transform_5, window_bounds = array<i64: 1, 16, 128>}]} {
    %c0 = arith.constant 0 : index
    %c0_0 = arith.constant 0 : index
    %0 = vector.load %arg3[%c0, %c0_0] : memref<32x16xf32, #tpu.memory_space<vmem>>, vector<32x16xf32>
    %c0_1 = arith.constant 0 : index
    %c0_2 = arith.constant 0 : index
    %1 = vector.load %arg4[%c0_1, %c0_2] : memref<32x1xf32, #tpu.memory_space<vmem>>, vector<32x1xf32>
    %c0_3 = arith.constant 0 : index
    %c0_4 = arith.constant 0 : index
    %2 = vector.load %arg5[%c0_3, %c0_4] : memref<16x32xf32, #tpu.memory_space<vmem>>, vector<16x32xf32>
    %c0_5 = arith.constant 0 : index
    %c0_6 = arith.constant 0 : index
    %3 = vector.load %arg6[%c0_5, %c0_6] : memref<16x1xf32, #tpu.memory_space<vmem>>, vector<16x1xf32>
    %c0_7 = arith.constant 0 : index
    %c0_8 = arith.constant 0 : index
    %c0_9 = arith.constant 0 : index
    %4 = vector.load %arg2[%c0_7, %c0_8, %c0_9] : memref<1x16x128xf32, #tpu.memory_space<vmem>>, vector<1x16x128xf32>
    %5 = vector.shape_cast %4 : vector<1x16x128xf32> to vector<16x128xf32>
    %cst = arith.constant dense<0.000000e+00> : vector<32x128xf32>
    %6 = tpu.matmul %0, %5, %cst {dimension_numbers = #tpu.dot_dimension_numbers<[1], [0], [0], [1], [0, 0, 1, 1], [], []>} : vector<32x16xf32>, vector<16x128xf32>, vector<32x128xf32> -> vector<32x128xf32>
    %7 = vector.broadcast %1 : vector<32x1xf32> to vector<32x128xf32>
    %8 = arith.addf %6, %7 : vector<32x128xf32>
    %cst_10 = arith.constant 2.000000e-01 : f32
    %9 = vector.broadcast %cst_10 : f32 to vector<32x128xf32>
    %10 = arith.mulf %9, %8 : vector<32x128xf32>
    %11 = arith.maximumf %8, %10 : vector<32x128xf32>
    %cst_11 = arith.constant dense<0.000000e+00> : vector<16x128xf32>
    %12 = tpu.matmul %2, %11, %cst_11 {dimension_numbers = #tpu.dot_dimension_numbers<[1], [0], [0], [1], [0, 0, 1, 1], [], []>} : vector<16x32xf32>, vector<32x128xf32>, vector<16x128xf32> -> vector<16x128xf32>
    %13 = vector.broadcast %3 : vector<16x1xf32> to vector<16x128xf32>
    %14 = arith.addf %12, %13 : vector<16x128xf32>
    %15 = arith.addf %14, %5 : vector<16x128xf32>
    %cst_12 = arith.constant 2.000000e-01 : f32
    %16 = vector.broadcast %cst_12 : f32 to vector<16x128xf32>
    %17 = arith.mulf %16, %15 : vector<16x128xf32>
    %18 = arith.maximumf %15, %17 : vector<16x128xf32>
    %c0_13 = arith.constant 0 : index
    %c0_14 = arith.constant 0 : index
    %c0_15 = arith.constant 0 : index
    %19 = vector.load %arg7[%c0_13, %c0_14, %c0_15] : memref<1x16x128xf32, #tpu.memory_space<vmem>>, vector<1x16x128xf32>
    %20 = vector.shape_cast %19 : vector<1x16x128xf32> to vector<16x128xf32>
    %21 = vector.shape_cast %18 : vector<16x128xf32> to vector<1x16x128xf32>
    tpu.vector_store %arg7[%c0_13, %c0_14, %c0_15], %21 {strides = array<i32>} : memref<1x16x128xf32, #tpu.memory_space<vmem>>, vector<1x16x128xf32>,
    return
  }
  func.func @transform_0(%arg0: i32, %arg1: i32) -> (i32, i32, i32) {
    %c0_i32 = arith.constant 0 : i32
    %c0_i32_0 = arith.constant 0 : i32
    return %arg0, %c0_i32, %arg1 : i32, i32, i32
  }
  func.func @transform_1(%arg0: i32, %arg1: i32) -> (i32, i32) {
    %c0_i32 = arith.constant 0 : i32
    %c0_i32_0 = arith.constant 0 : i32
    %c0_i32_1 = arith.constant 0 : i32
    return %c0_i32, %c0_i32_0 : i32, i32
  }
  func.func @transform_2(%arg0: i32, %arg1: i32) -> (i32, i32) {
    %c0_i32 = arith.constant 0 : i32
    %c0_i32_0 = arith.constant 0 : i32
    %c0_i32_1 = arith.constant 0 : i32
    return %c0_i32, %c0_i32_0 : i32, i32
  }
  func.func @transform_3(%arg0: i32, %arg1: i32) -> (i32, i32) {
    %c0_i32 = arith.constant 0 : i32
    %c0_i32_0 = arith.constant 0 : i32
    %c0_i32_1 = arith.constant 0 : i32
    return %c0_i32, %c0_i32_0 : i32, i32
  }
  func.func @transform_4(%arg0: i32, %arg1: i32) -> (i32, i32) {
    %c0_i32 = arith.constant 0 : i32
    %c0_i32_0 = arith.constant 0 : i32
    %c0_i32_1 = arith.constant 0 : i32
    return %c0_i32, %c0_i32_0 : i32, i32
  }
  func.func @transform_5(%arg0: i32, %arg1: i32) -> (i32, i32, i32) {
    %c0_i32 = arith.constant 0 : i32
    %c0_i32_0 = arith.constant 0 : i32
    return %arg0, %c0_i32, %arg1 : i32, i32, i32
  }
}

</mosaic_0001>

<llo_original>
// kernel: tpu_custom_call.1
$region0: #{tpu_custom_call.1}
  #allocation0 [shape = 'u32[]', space=smem, size = 0x4, offset = 0x4, fixed_abs, tag = 'smem constant byte address 0x4 - core index']
  #allocation1 [shape = 'u32[72,128]{1,0:T(1,128)}', space=vmem, size = 0x9000, scoped, tag = 'internal scratch']
  %s0 = inlined_call_operand.vmem [shape: f32[2,16,128], index: 0, kind: input, shape index: {}]
  %s1 = inlined_call_operand.vmem [shape: f32[32,16], index: 1, kind: input, shape index: {}]
  %s2 = inlined_call_operand.vmem [shape: f32[32,1], index: 2, kind: input, shape index: {}]
  %s3 = inlined_call_operand.vmem [shape: f32[16,32], index: 3, kind: input, shape index: {}]
  %s4 = inlined_call_operand.vmem [shape: f32[16,1], index: 4, kind: input, shape index: {}]
  %s5 = inlined_call_operand.hbm [shape: f32[2,16,128], index: 5, kind: output, shape index: {}]
  %s6 = sld [smem:[#allocation0]]
  $region53: #{tpu_custom_call.1} parent=0
    _
  %s8 = ssub.s32 1, %s6
  %s9 = scalar_select 0, %s8, %s6
  $region1: #{tpu_custom_call.1} parent=0
    #allocation2 [shape = 'u8[16384]{0}', space=vmem, size = 0x4000, scoped, tag = 'output window, operand 0']
    #allocation3 [shape = 's32[2]{0}', space=sflag, size = 0x8, scoped, tag = 'scoped memory for tpu_custom_call.1']
    %10 = vsyncpa [#allocation3], 0
    %s11 = scalar_lea.sflag [#allocation3], 1
    %12 = vsyncpa %s11, 0
    loop: start=0, step=1, limit=4
    $region2: #{tpu_custom_call.1} parent=1 // loop_pre_header
      _
    $region3: #{tpu_custom_call.1} parent=1 // loop_header
      %s14 = sphi 0, %s18
      %p15 = scmp.ge.s32.totalorder %s14, 4
      %s21 = sphi 0, %s33
      %s22 = sphi 0, %s29
      %s23 = sphi 0, %s21
      %s24 = sphi 0, %s22
      %s25 = sphi 0, %s23
      %s26 = sphi 0, %s24
      %s38 = sphi 0, %s40
      %s41 = sphi 0, %s38
      %s42 = sphi 0, %s41
      %s58 = sphi 0, %s42
      %s62 = sphi 0, %s62
      %s64 = sphi 0, %s62
      %s65 = sphi 0, %s64
      %s79 = sphi 0, %s65
      %s83 = sphi 0, %s83
      %s85 = sphi 0, %s83
      %s86 = sphi 0, %s85
      %s100 = sphi 0, %s86
      %s104 = sphi 0, %s104
      %s106 = sphi 0, %s104
      %s107 = sphi 0, %s106
      %s121 = sphi 0, %s107
      %s125 = sphi 0, %s125
      %s127 = sphi 0, %s125
      %s128 = sphi 0, %s127
      %s142 = sphi 0, %s128
      %s150 = sphi 0, %s152
      %s153 = sphi 0, %s150
      %s154 = sphi 0, %s153
      %s170 = sphi 0, %s154
    $region4: #{tpu_custom_call.1} parent=1 // loop_header_branch
      %17 = sbr.rel (%p15) target = $region8
    $region5: #{tpu_custom_call.1} parent=1 // loop_body
      %s19 = ssub.s32 %s14, 1
      %s20 = ssub.s32 %s14, 2
      %s27 = sadd.s32 1, %s22
      %p28 = scmp.ge.s32.totalorder %s27, 1
      %s29 = scalar_select %p28, 0, %s27
      %s30 = sadd.s32 1, %s21
      %s31 = scalar_select %p28, %s30, %s21
      %p32 = scmp.ge.s32.totalorder %s31, 2
      %s33 = scalar_select %p32, 0, %s31
      %s34 = ssub.s32 %s21, %s33
      %s35 = ssub.s32 %s22, %s29
      %s36 = sor.u32 %s34, %s35
      %p37 = scmp.eq.s32.totalorder %s36, 0
      %s39 = sadd.s32 %s38, 1
      %s40 = scalar_select %p37, %s38, %s39
      %p43 = pneg %p37
      %p44 = scmp.eq.s32.totalorder %s14, 1
      %p45 = por %p43, %p44
      %p46 = scmp.ne.s32.totalorder %s38, %s41
      %p47 = scmp.eq.s32.totalorder %s14, 0
      %p48 = por %p46, %p47
      %p49 = scmp.ne.s32.totalorder %s38, %s41
      %p50 = scmp.eq.s32.totalorder %s19, 1
      %p51 = por %p49, %p50
      %p52 = scmp.ne.s32.totalorder %s41, %s42
      %p53 = scmp.eq.s32.totalorder %s19, 0
      %p54 = por %p52, %p53
      %p55 = scmp.ne.s32.totalorder %s41, %s42
      %p56 = scmp.eq.s32.totalorder %s20, 1
      %p57 = por %p55, %p56
      %p59 = scmp.ne.s32.totalorder %s42, %s58
      %p60 = scmp.eq.s32.totalorder %s20, 0
      %p61 = por %p59, %p60
      %s63 = sadd.s32 %s62, 1
      %p66 = scmp.eq.s32.totalorder %s14, 1
      %p67 = scmp.ne.s32.totalorder %s62, %s64
      %p68 = scmp.eq.s32.totalorder %s14, 0
      %p69 = por %p67, %p68
      %p70 = scmp.ne.s32.totalorder %s62, %s64
      %p71 = scmp.eq.s32.totalorder %s19, 1
      %p72 = por %p70, %p71
      %p73 = scmp.ne.s32.totalorder %s64, %s65
      %p74 = scmp.eq.s32.totalorder %s19, 0
      %p75 = por %p73, %p74
      %p76 = scmp.ne.s32.totalorder %s64, %s65
      %p77 = scmp.eq.s32.totalorder %s20, 1
      %p78 = por %p76, %p77
      %p80 = scmp.ne.s32.totalorder %s65, %s79
      %p81 = scmp.eq.s32.totalorder %s20, 0
      %p82 = por %p80, %p81
      %s84 = sadd.s32 %s83, 1
      %p87 = scmp.eq.s32.totalorder %s14, 1
      %p88 = scmp.ne.s32.totalorder %s83, %s85
      %p89 = scmp.eq.s32.totalorder %s14, 0
      %p90 = por %p88, %p89
      %p91 = scmp.ne.s32.totalorder %s83, %s85
      %p92 = scmp.eq.s32.totalorder %s19, 1
      %p93 = por %p91, %p92
      %p94 = scmp.ne.s32.totalorder %s85, %s86
      %p95 = scmp.eq.s32.totalorder %s19, 0
      %p96 = por %p94, %p95
      %p97 = scmp.ne.s32.totalorder %s85, %s86
      %p98 = scmp.eq.s32.totalorder %s20, 1
      %p99 = por %p97, %p98
      %p101 = scmp.ne.s32.totalorder %s86, %s100
      %p102 = scmp.eq.s32.totalorder %s20, 0
      %p103 = por %p101, %p102
      %s105 = sadd.s32 %s104, 1
      %p108 = scmp.eq.s32.totalorder %s14, 1
      %p109 = scmp.ne.s32.totalorder %s104, %s106
      %p110 = scmp.eq.s32.totalorder %s14, 0
      %p111 = por %p109, %p110
      %p112 = scmp.ne.s32.totalorder %s104, %s106
      %p113 = scmp.eq.s32.totalorder %s19, 1
      %p114 = por %p112, %p113
      %p115 = scmp.ne.s32.totalorder %s106, %s107
      %p116 = scmp.eq.s32.totalorder %s19, 0
      %p117 = por %p115, %p116
      %p118 = scmp.ne.s32.totalorder %s106, %s107
      %p119 = scmp.eq.s32.totalorder %s20, 1
      %p120 = por %p118, %p119
      %p122 = scmp.ne.s32.totalorder %s107, %s121
      %p123 = scmp.eq.s32.totalorder %s20, 0
      %p124 = por %p122, %p123
      %s126 = sadd.s32 %s125, 1
      %p129 = scmp.eq.s32.totalorder %s14, 1
      %p130 = scmp.ne.s32.totalorder %s125, %s127
      %p131 = scmp.eq.s32.totalorder %s14, 0
      %p132 = por %p130, %p131
      %p133 = scmp.ne.s32.totalorder %s125, %s127
      %p134 = scmp.eq.s32.totalorder %s19, 1
      %p135 = por %p133, %p134
      %p136 = scmp.ne.s32.totalorder %s127, %s128
      %p137 = scmp.eq.s32.totalorder %s19, 0
      %p138 = por %p136, %p137
      %p139 = scmp.ne.s32.totalorder %s127, %s128
      %p140 = scmp.eq.s32.totalorder %s20, 1
      %p141 = por %p139, %p140
      %p143 = scmp.ne.s32.totalorder %s128, %s142
      %p144 = scmp.eq.s32.totalorder %s20, 0
      %p145 = por %p143, %p144
      %s146 = ssub.s32 %s21, %s33
      %s147 = ssub.s32 %s22, %s29
      %s148 = sor.u32 %s146, %s147
      %p149 = scmp.eq.s32.totalorder %s148, 0
      %s151 = sadd.s32 %s150, 1
      %s152 = scalar_select %p149, %s150, %s151
      %p155 = pneg %p149
      %p156 = scmp.eq.s32.totalorder %s14, 1
      %p157 = por %p155, %p156
      %p158 = scmp.ne.s32.totalorder %s150, %s153
      %p159 = scmp.eq.s32.totalorder %s14, 0
      %p160 = por %p158, %p159
      %p161 = scmp.ne.s32.totalorder %s150, %s153
      %p162 = scmp.eq.s32.totalorder %s19, 1
      %p163 = por %p161, %p162
      %p164 = scmp.ne.s32.totalorder %s153, %s154
      %p165 = scmp.eq.s32.totalorder %s19, 0
      %p166 = por %p164, %p165
      %p167 = scmp.ne.s32.totalorder %s153, %s154
      %p168 = scmp.eq.s32.totalorder %s20, 1
      %p169 = por %p167, %p168
      %p171 = scmp.ne.s32.totalorder %s154, %s170
      %p172 = scmp.eq.s32.totalorder %s20, 0
      %p173 = por %p171, %p172
      %p174 = scmp.le.s32.totalorder 1, %s14
      %p175 = scmp.lt.s32.totalorder %s14, 3
      %p176 = pnand %p174, %p175
      %p177 = pneg %p176
      // Predicated region
      $region9: #{tpu_custom_call.1} parent=5 // pred_check
        _
      $region10: #{tpu_custom_call.1} parent=5 // pred_check_branch
        %179 = sbr.rel (%p176) target = $region12
      $region11: #{tpu_custom_call.1} parent=5 // pred_region
        %s180 = ssub.s32 %s14, 1
        // Predicated region
        $region13: #{tpu_custom_call.1} parent=11 // pred_check
          %p181 = pneg %p75
        $region14: #{tpu_custom_call.1} parent=11 // pred_check_branch
          %183 = sbr.rel (%p181) target = $region16
        $region15: #{tpu_custom_call.1} parent=11 // pred_region
          _
        $region16: #{tpu_custom_call.1} parent=11 // pred_fallthru
          _
        // Predicated region
        $region17: #{tpu_custom_call.1} parent=11 // pred_check
          %p184 = pneg %p96
        $region18: #{tpu_custom_call.1} parent=11 // pred_check_branch
          %186 = sbr.rel (%p184) target = $region20
        $region19: #{tpu_custom_call.1} parent=11 // pred_region
          _
        $region20: #{tpu_custom_call.1} parent=11 // pred_fallthru
          _
        // Predicated region
        $region21: #{tpu_custom_call.1} parent=11 // pred_check
          %p187 = pneg %p117
        $region22: #{tpu_custom_call.1} parent=11 // pred_check_branch
          %189 = sbr.rel (%p187) target = $region24
        $region23: #{tpu_custom_call.1} parent=11 // pred_region
          _
        $region24: #{tpu_custom_call.1} parent=11 // pred_fallthru
          _
        // Predicated region
        $region25: #{tpu_custom_call.1} parent=11 // pred_check
          %p190 = pneg %p138
        $region26: #{tpu_custom_call.1} parent=11 // pred_check_branch
          %192 = sbr.rel (%p190) target = $region28
        $region27: #{tpu_custom_call.1} parent=11 // pred_region
          _
        $region28: #{tpu_custom_call.1} parent=11 // pred_fallthru
          _
      $region12: #{tpu_custom_call.1} parent=5 // pred_fallthru
        _
      %p193 = scmp.lt.s32.totalorder %s14, 2
      // Predicated region
      $region29: #{tpu_custom_call.1} parent=5 // pred_check
        %p194 = pneg %p193
      $region30: #{tpu_custom_call.1} parent=5 // pred_check_branch
        %196 = sbr.rel (%p194) target = $region32
      $region31: #{tpu_custom_call.1} parent=5 // pred_region
        // Predicated region
        $region33: #{tpu_custom_call.1} parent=31 // pred_check
          %p197 = pneg %p48
        $region34: #{tpu_custom_call.1} parent=31 // pred_check_branch
          %199 = sbr.rel (%p197) target = $region36
        $region35: #{tpu_custom_call.1} parent=31 // pred_region
          %p200 = scmp.lt.s32.totalorder %s21, 1
          %s201 = scalar_select %p200, %s21, 1
          %p202 = scmp.lt.s32.totalorder %s22, 0
          %s203 = scalar_select %p202, %s22, 0
          %s204 = smul.addr %s201, 2
          %s205 = sadd.s32 %s203, %s204
          %s206 = smul.addr %s205, 8
          %s207 = scalar_lea.vmem %s0, %s206
        $region36: #{tpu_custom_call.1} parent=31 // pred_fallthru
          _
      $region32: #{tpu_custom_call.1} parent=5 // pred_fallthru
        _
      %p208 = scmp.le.s32.totalorder 1, %s14
      %p209 = scmp.lt.s32.totalorder %s14, 3
      %p210 = pnand %p208, %p209
      %p211 = pneg %p210
      // Predicated region
      $region37: #{tpu_custom_call.1} parent=5 // pred_check
        _
      $region38: #{tpu_custom_call.1} parent=5 // pred_check_branch
        %213 = sbr.rel (%p210) target = $region40
      $region39: #{tpu_custom_call.1} parent=5 // pred_region
        %s214 = ssub.s32 %s14, 1
        %p215 = scmp.lt.s32.totalorder %s23, 1
        %s216 = scalar_select %p215, %s23, 1
        %p217 = scmp.lt.s32.totalorder %s24, 0
        %s218 = scalar_select %p217, %s24, 0
        %s219 = smul.addr %s216, 2
        %s220 = sadd.s32 %s218, %s219
        %s221 = smul.addr %s220, 8
        %s222 = scalar_lea.vmem %s0, %s221
        %p223 = pneg %p54
        %p224 = pneg %p51
        %p225 = pneg %p75
        %p226 = pneg %p72
        %p227 = pneg %p96
        %p228 = pneg %p93
        %p229 = pneg %p117
        %p230 = pneg %p114
        %p231 = pneg %p138
        %p232 = pneg %p135
        %p233 = pneg %p166
        %p234 = pneg %p163
        %s235 = sand.u32 %s153, 1
        %s236 = scalar_lea.sflag [#allocation3], %s235
        %s237 = sand.u32 %s153, 1
        %s238 = smul.addr %s237, 16
        %s239 = scalar_lea.vmem [#allocation2], %s238
        %p240 = scmp.lt.s32.totalorder %s23, 1
        %s241 = scalar_select %p240, %s23, 1
        %p242 = scmp.lt.s32.totalorder %s24, 0
        %s243 = scalar_select %p242, %s24, 0
        %s244 = smul.addr %s241, 2
        %s245 = sadd.s32 %s243, %s244
        %s246 = smul.addr %s245, 8
        %s247 = scalar_lea.vmem %s0, %s246
        %v248 = vld [vmem:[%s1] sm:$0xff]
        %v249 = vld [vmem:[%s1 + $0x8] sm:$0xff]
        %v250 = vld [vmem:[%s1 + $0x10] sm:$0xff]
        %v251 = vld [vmem:[%s1 + $0x18] sm:$0xff]
        %v252 = vld [vmem:[%s2] sm:$0xff]
        %v253 = vld [vmem:[%s2 + $0x8] sm:$0xff]
        %v254 = vld [vmem:[%s2 + $0x10] sm:$0xff]
        %v255 = vld [vmem:[%s2 + $0x18] sm:$0xff]
        %v256 = vld [vmem:[%s3] sm:$0xff]
        %v257 = vld [vmem:[%s3 + $0x8] sm:$0xff]
        %v258 = vld [vmem:[%s4] sm:$0xff]
        %v259 = vld [vmem:[%s4 + $0x8] sm:$0xff]
        %v260 = vld [vmem:[%s247] sm:$0xff]
        %v261 = vld [vmem:[%s247 + $0x8] sm:$0xff]
        %263 = vset.pattern.permute.xlu0 0
        %264 = vperm.xlu0 %263, %v252
        %v265 = vpop.permute.xlu0 %264
        %268 = vset.pattern.permute.xlu0 0
        %269 = vperm.xlu0 %268, %v253
        %v270 = vpop.permute.xlu0 %269
        %273 = vset.pattern.permute.xlu0 0
        %274 = vperm.xlu0 %273, %v254
        %v275 = vpop.permute.xlu0 %274
        %278 = vset.pattern.permute.xlu0 0
        %279 = vperm.xlu0 %278, %v255
        %v280 = vpop.permute.xlu0 %279
        %vm282 = vcmask 130048
        %v284 = vsel %vm282, %v248, 0
        %v287 = vsel %vm282, %v249, 0
        %v290 = vsel %vm282, %v250, 0
        %v293 = vsel %vm282, %v251, 0
        %295 = vmatpush.msra.mxu0 0.0
        %296 = vmatpush.msra.mxu0 0.0
        %297 = vmatpush.msra.mxu0 0.0
        %298 = vmatpush.msra.mxu0 0.0
        %299 = vmatpush.msra.mxu0 0.0
        %300 = vmatpush.msra.mxu0 0.0
        %301 = vmatpush.msra.mxu0 0.0
        %302 = vmatpush.msra.mxu0 0.0
        %303 = vmatpush.msra.mxu0 0.0
        %304 = vmatpush.msra.mxu0 0.0
        %305 = vmatpush.msra.mxu0 0.0
        %306 = vmatpush.msra.mxu0 0.0
        %307 = vmatpush.msra.mxu0 0.0
        %308 = vmatpush.msra.mxu0 0.0
        %309 = vmatpush.msra.mxu0 %v261
        %310 = vmatpush.msra.mxu0 %v260
        %311 = vmatmul.f32.gmra.mxu0 %v284
        %v312 = vpop.f32.mrf.mxu0
        %v313 = vadd.f32 %v265, %v312
        %314 = vmatmul.f32.gmra.mxu0 %v287
        %v315 = vpop.f32.mrf.mxu0
        %v316 = vadd.f32 %v270, %v315
        %317 = vmatmul.f32.gmra.mxu0 %v290
        %v318 = vpop.f32.mrf.mxu0
        %v319 = vadd.f32 %v275, %v318
        %320 = vmatmul.f32.gmra.mxu0 %v293
        %v321 = vpop.f32.mrf.mxu0
        %v322 = vadd.f32 %v280, %v321
        %323 = vdwg.mxu0
        %v324 = vmul.f32 %v313, 0.2
        %v325 = vmul.f32 %v316, 0.2
        %v326 = vmul.f32 %v319, 0.2
        %v327 = vmul.f32 %v322, 0.2
        %v328 = vmax.f32 %v313, %v324
        %v329 = vmax.f32 %v316, %v325
        %v330 = vmax.f32 %v319, %v326
        %v331 = vmax.f32 %v322, %v327
        %333 = vset.pattern.permute.xlu0 0
        %334 = vperm.xlu0 %333, %v258
        %v335 = vpop.permute.xlu0 %334
        %338 = vset.pattern.permute.xlu0 0
        %339 = vperm.xlu0 %338, %v259
        %v340 = vpop.permute.xlu0 %339
        %vm342 = vcmask 261120
        %v344 = vsel %vm342, %v256, 0
        %v347 = vsel %vm342, %v257, 0
        %349 = vmatpush.msra.mxu0 0.0
        %350 = vmatpush.msra.mxu0 0.0
        %351 = vmatpush.msra.mxu0 0.0
        %352 = vmatpush.msra.mxu0 0.0
        %353 = vmatpush.msra.mxu0 0.0
        %354 = vmatpush.msra.mxu0 0.0
        %355 = vmatpush.msra.mxu0 0.0
        %356 = vmatpush.msra.mxu0 0.0
        %357 = vmatpush.msra.mxu0 0.0
        %358 = vmatpush.msra.mxu0 0.0
        %359 = vmatpush.msra.mxu0 0.0
        %360 = vmatpush.msra.mxu0 0.0
        %361 = vmatpush.msra.mxu0 %v331
        %362 = vmatpush.msra.mxu0 %v330
        %363 = vmatpush.msra.mxu0 %v329
        %364 = vmatpush.msra.mxu0 %v328
        %365 = vmatmul.f32.gmra.mxu0 %v344
        %v366 = vpop.f32.mrf.mxu0
        %v367 = vadd.f32 %v335, %v366
        %368 = vmatmul.f32.gmra.mxu0 %v347
        %v369 = vpop.f32.mrf.mxu0
        %v370 = vadd.f32 %v340, %v369
        %371 = vdwg.mxu0
        %v372 = vadd.f32 %v367, %v260
        %v373 = vadd.f32 %v370, %v261
        %v374 = vmul.f32 %v372, 0.2
        %v375 = vmul.f32 %v373, 0.2
        %v376 = vmax.f32 %v372, %v374
        %v377 = vmax.f32 %v373, %v375
        %378 = vst [vmem:[%s239] sm:$0xff] %v376
        %379 = vst [vmem:[%s239 + $0x8] sm:$0xff] %v377
        %s380 = sand.u32 %s153, 1
        %s381 = scalar_lea.sflag [#allocation3], %s380
        %s382 = sand.u32 %s153, 1
        %s383 = smul.addr %s382, 16
        %s384 = scalar_lea.vmem [#allocation2], %s383
        // Predicated region
        $region41: #{tpu_custom_call.1} parent=39 // pred_check
          %p385 = pneg %p163
        $region42: #{tpu_custom_call.1} parent=39 // pred_check_branch
          %387 = sbr.rel (%p385) target = $region44
        $region43: #{tpu_custom_call.1} parent=39 // pred_region
          %389 = vsyncadd %s381, 0
          %s390 = smul.addr %s23, 2
          %s391 = sadd.s32 %s24, %s390
          %s392 = smul.addr %s391, 8
          %s393 = scalar_lea.hbm %s5, %s392
          %s394 = sshll.u32 %s384, 4
          %s395 = int_to_ptr.vmem [resolvable:$true] %s394
          %s396 = sshll.u32 %s393, 4
          %s397 = int_to_ptr.hbm [resolvable:$true] %s396
          %402 = dma.vmem_to_hbm [thread:$0]  %s395, 256, %s397, %s381, 128, 128, 8
        $region44: #{tpu_custom_call.1} parent=39 // pred_fallthru
          _
      $region40: #{tpu_custom_call.1} parent=5 // pred_fallthru
        _
      %p403 = scmp.le.s32.totalorder 2, %s14
      // Predicated region
      $region45: #{tpu_custom_call.1} parent=5 // pred_check
        %p404 = pneg %p403
      $region46: #{tpu_custom_call.1} parent=5 // pred_check_branch
        %406 = sbr.rel (%p404) target = $region48
      $region47: #{tpu_custom_call.1} parent=5 // pred_region
        %s407 = ssub.s32 %s14, 2
        // Predicated region
        $region49: #{tpu_custom_call.1} parent=47 // pred_check
          %p408 = pneg %p169
        $region50: #{tpu_custom_call.1} parent=47 // pred_check_branch
          %410 = sbr.rel (%p408) target = $region52
        $region51: #{tpu_custom_call.1} parent=47 // pred_region
          %s411 = sand.u32 %s154, 1
          %s412 = scalar_lea.sflag [#allocation3], %s411
          %s413 = sand.u32 %s154, 1
          %s414 = smul.addr %s413, 16
          %s415 = scalar_lea.vmem [#allocation2], %s414
          %417 = dma.done %s412, 256
        $region52: #{tpu_custom_call.1} parent=47 // pred_fallthru
          _
      $region48: #{tpu_custom_call.1} parent=5 // pred_fallthru
        _
    $region6: #{tpu_custom_call.1} parent=1 // loop_footer
      %s18 = sadd.s32 1, %s14
    $region7: #{tpu_custom_call.1} parent=1 // loop_footer_branch
      %13 = sbr.rel target = $region3
    $region8: #{tpu_custom_call.1} parent=1 // loop_exit
      _
    %418 = vsyncpa [#allocation3], 1
    %s419 = scalar_lea.sflag [#allocation3], 1
    %420 = vsyncpa %s419, 1

</llo_original>
